<compile_context>
chip_gen: v5e
topology: v5e:2x2
jax: 0.10.0
libtpu: 0.0.40
codegen_flags: <defaults>
</compile_context>

<pallas_src>
import jax
import jax.numpy as jnp
from jax import lax
from jax.experimental import pallas as pl
from jax.experimental.pallas import tpu as pltpu


SUBLANE = 8        # batch rows padded to a multiple of this (single-block path)
LANE = 128         # batch tile rounded to this when the grid has >1 block
TB_MAX = 4096      # max rows per grid step (amortizes ~0.35 us per-step overhead)
MIN_PALLAS_BATCH = 512  # below this, plain fused XLA beats kernel launch cost


def _round_up(n, m):
    return ((n + m - 1) // m) * m


def _choose_batch_tile(B):
    """Pick (tile_rows, num_blocks) for the 1-D batch grid."""
    if B <= MIN_PALLAS_BATCH:
        # Single block; batch only needs sublane (8) alignment.
        return _round_up(max(B, SUBLANE), SUBLANE), 1
    # >=2 blocks so dimension_semantics=("parallel",) can use both v7x TCs;
    # tile rounded to 128 so the transposed output block stays lane-dense.
    n = max(2, -(-B // TB_MAX))
    tb = _round_up(-(-B // n), LANE)
    n = -(-B // tb)
    return tb, n


def _qnet_kernel(x_ref, w1_ref, b1_ref, w2t_ref, b2t_ref, ot_ref):
    # Layer 1: cast x to bf16 in-kernel (free VPU filler under MXU/DMA slack),
    # MXU matmul with f32 accumulation, bias + ReLU in f32.
    x = x_ref[...].astype(jnp.bfloat16)                                  # (tb, IN)
    h = jnp.dot(x, w1_ref[...], preferred_element_type=jnp.float32)     # (tb, HID)
    h = jnp.maximum(h + b1_ref[...], 0.0)
    # Layer 2, computed directly in transposed form (same q.k^T dot_general
    # pattern as flash attention) so the store is lane-dense along batch:
    #   (OUT, HID) . (tb, HID)^T -> (OUT, tb)
    ot = lax.dot_general(w2t_ref[...], h.astype(jnp.bfloat16),
                         dimension_numbers=(((1,), (1,)), ((), ())),
                         preferred_element_type=jnp.float32)             # (OUT, tb)
    ot_ref[...] = (ot + b2t_ref[...]).astype(ot_ref.dtype)


def _pallas_forward(x, w1, b1, w2t, b2t):
    """Fused y = relu(x @ w1 + b1) @ w2 + b2 via a single Pallas kernel."""
    B, IN = x.shape
    HID = w1.shape[1]
    OUT = w2t.shape[0]

    tb, n_blocks = _choose_batch_tile(B)
    b_p = tb * n_blocks
    if b_p != B:
        x = jnp.pad(x, ((0, b_p - B), (0, 0)))   # batch-only zero pad, stays f32

    flops = 2 * b_p * (IN * HID + HID * OUT)
    bytes_accessed = (b_p * IN * 4 + w1.size * 2 + b1.size * 4
                      + w2t.size * 2 + b2t.size * 4 + OUT * b_p * 4)

    out_t = pl.pallas_call(
        _qnet_kernel,
        out_shape=jax.ShapeDtypeStruct((OUT, b_p), jnp.float32),
        grid=(n_blocks,),
        in_specs=[
            pl.BlockSpec((tb, IN), lambda i: (i, 0)),     # x: streamed per tile, unpadded f32
            pl.BlockSpec((IN, HID), lambda i: (0, 0)),    # w1: resident in VMEM
            pl.BlockSpec((1, HID), lambda i: (0, 0)),     # b1: resident
            pl.BlockSpec((OUT, HID), lambda i: (0, 0)),   # w2^T: resident
            pl.BlockSpec((OUT, 1), lambda i: (0, 0)),     # b2 (column): resident
        ],
        out_specs=pl.BlockSpec((OUT, tb), lambda i: (0, i)),  # lane-dense along batch
        compiler_params=pltpu.CompilerParams(
            dimension_semantics=("parallel",)),
        cost_estimate=pl.CostEstimate(flops=flops, transcendentals=0,
                                      bytes_accessed=bytes_accessed),
    )(x, w1, b1, w2t, b2t)

    # Tiny (OUT, B) slice + transpose back to the PyTorch (B, OUT) layout.
    return out_t[:, :B].T


def _xla_forward(x, w1, b1, w2t, b2t):
    """Small-batch path: let XLA fuse the two dots (same bf16/f32 math)."""
    h = jnp.maximum(jnp.dot(x.astype(jnp.bfloat16), w1,
                            preferred_element_type=jnp.float32) + b1, 0.0)
    ot = lax.dot_general(w2t, h.astype(jnp.bfloat16),
                         dimension_numbers=(((1,), (1,)), ((), ())),
                         preferred_element_type=jnp.float32) + b2t
    return ot.T


def linear_qnet_forward(x, params):
    """Forward pass. params = prepare_params(...); dispatches tiny batches to XLA."""
    w1, b1, w2t, b2t = params
    if x.shape[0] < MIN_PALLAS_BATCH:
        return _xla_forward(x, w1, b1, w2t, b2t)
    return _pallas_forward(x, w1, b1, w2t, b2t)


def prepare_params(w1, b1, w2, b2):
    """One-time weight prep (hoisted out of the per-call forward).

    w1: (IN, HID), b1: (HID,), w2: (HID, OUT), b2: (OUT,)  — all f32,
    stored transposed vs. PyTorch's (out, in) layout.
    """
    w1_p = w1.astype(jnp.bfloat16)                  # (IN, HID)
    b1_p = b1.reshape(1, -1).astype(jnp.float32)    # (1, HID)
    w2t = w2.T.astype(jnp.bfloat16)                 # (OUT, HID)
    b2t = b2.reshape(-1, 1).astype(jnp.float32)     # (OUT, 1)
    return w1_p, b1_p, w2t, b2t


def init_params(key, input_size, hidden_size, output_size):
    """Deterministic init matching nn.Linear's U(-1/sqrt(fan_in), 1/sqrt(fan_in))."""
    k1, k2, k3, k4 = jax.random.split(key, 4)
    lim1 = 1.0 / jnp.sqrt(input_size)
    lim2 = 1.0 / jnp.sqrt(hidden_size)
    w1 = jax.random.uniform(k1, (input_size, hidden_size), jnp.float32, -lim1, lim1)
    b1 = jax.random.uniform(k2, (hidden_size,), jnp.float32, -lim1, lim1)
    w2 = jax.random.uniform(k3, (hidden_size, output_size), jnp.float32, -lim2, lim2)
    b2 = jax.random.uniform(k4, (output_size,), jnp.float32, -lim2, lim2)
    return w1, b1, w2, b2


# TODO(synk): save()/load_model() checkpoint I/O is host-side torch.save/load
# and has no kernel equivalent; omitted.

if __name__ == "__main__":
    # Shapes consistent with the typical snake-game QNet usage of this module.
    BATCH, INPUT_SIZE, HIDDEN_SIZE, OUTPUT_SIZE = 4, 11, 32, 3

    key = jax.random.PRNGKey(0)
    kx, kp, kx2 = jax.random.split(key, 3)
    x_small = jax.random.normal(kx, (BATCH, INPUT_SIZE), jnp.float32)
    w1, b1, w2, b2 = init_params(kp, INPUT_SIZE, HIDDEN_SIZE, OUTPUT_SIZE)
    params = prepare_params(w1, b1, w2, b2)

    def ref_f32(xa):  # full-precision reference = PyTorch forward math
        return jnp.maximum(xa @ w1 + b1, 0.0) @ w2 + b2

    fwd_pallas = jax.jit(_pallas_forward)

    # 1) Small batch forced through the Pallas kernel (single-block path).
    out_small = jax.block_until_ready(fwd_pallas(x_small, *params))
    assert out_small.shape == (BATCH, OUTPUT_SIZE)
    assert jnp.allclose(out_small, ref_f32(x_small), atol=5e-2, rtol=5e-2)

    # Matched-precision check: kernel vs the identical bf16/f32 XLA expression.
    out_xla = jax.block_until_ready(jax.jit(_xla_forward)(x_small, *params))
    assert jnp.allclose(out_small, out_xla, atol=2e-3, rtol=2e-3)

    # 2) Larger batch exercises the tiled multi-block (megacore-friendly) path.
    B2 = 1000
    x_big = jax.random.normal(kx2, (B2, INPUT_SIZE), jnp.float32)
    out_big = jax.block_until_ready(fwd_pallas(x_big, *params))
    assert out_big.shape == (B2, OUTPUT_SIZE)
    assert jnp.allclose(out_big, ref_f32(x_big), atol=5e-2, rtol=5e-2)

    # 3) Auto-dispatch wrapper (tiny batch -> fused XLA path) stays consistent.
    out_disp = jax.block_until_ready(jax.jit(linear_qnet_forward)(x_small, params))
    assert jnp.allclose(out_disp, out_small, atol=2e-3, rtol=2e-3)

    print("KERNEL_OK")
</pallas_src>

<mosaic_0001>
module attributes {stable_mosaic.version = 11 : i64} {
  func.func @_qnet_kernel(%arg0: i32, %arg1: memref<8x11xf32, #tpu.memory_space<vmem>>, %arg2: memref<11x32xbf16, #tpu.memory_space<vmem>>, %arg3: memref<1x32xf32, #tpu.memory_space<vmem>>, %arg4: memref<3x32xbf16, #tpu.memory_space<vmem>>, %arg5: memref<3x1xf32, #tpu.memory_space<vmem>>, %arg6: memref<3x8xf32, #tpu.memory_space<vmem>>) attributes {dimension_semantics = [#tpu.dimension_semantics<parallel>], iteration_bounds = array<i64: 1>, scalar_prefetch = 0 : i64, scratch_operands = 0 : i64, tpu.core_type = #tpu.core_type<tc>, window_params = [{transform_indices = @transform_0, window_bounds = array<i64: 8, 11>}, {pipeline_mode = #tpu.pipeline_mode<synchronous>, transform_indices = @transform_1, window_bounds = array<i64: 11, 32>}, {pipeline_mode = #tpu.pipeline_mode<synchronous>, transform_indices = @transform_2, window_bounds = array<i64: 1, 32>}, {pipeline_mode = #tpu.pipeline_mode<synchronous>, transform_indices = @transform_3, window_bounds = array<i64: 3, 32>}, {pipeline_mode = #tpu.pipeline_mode<synchronous>, transform_indices = @transform_4, window_bounds = array<i64: 3, 1>}, {transform_indices = @transform_5, window_bounds = array<i64: 3, 8>}]} {
    %c0 = arith.constant 0 : index
    %c0_0 = arith.constant 0 : index
    %0 = vector.load %arg1[%c0, %c0_0] : memref<8x11xf32, #tpu.memory_space<vmem>>, vector<8x11xf32>
    %1 = arith.truncf %0 : vector<8x11xf32> to vector<8x11xbf16>
    %c0_1 = arith.constant 0 : index
    %c0_2 = arith.constant 0 : index
    %2 = vector.load %arg2[%c0_1, %c0_2] : memref<11x32xbf16, #tpu.memory_space<vmem>>, vector<11x32xbf16>
    %cst = arith.constant dense<0.000000e+00> : vector<8x32xf32>
    %3 = tpu.matmul %1, %2, %cst {dimension_numbers = #tpu.dot_dimension_numbers<[1], [0], [0], [1], [0, 0, 1, 1], [], []>} : vector<8x11xbf16>, vector<11x32xbf16>, vector<8x32xf32> -> vector<8x32xf32>
    %c0_3 = arith.constant 0 : index
    %c0_4 = arith.constant 0 : index
    %4 = vector.load %arg3[%c0_3, %c0_4] : memref<1x32xf32, #tpu.memory_space<vmem>>, vector<1x32xf32>
    %5 = vector.broadcast %4 : vector<1x32xf32> to vector<8x32xf32>
    %6 = arith.addf %3, %5 : vector<8x32xf32>
    %cst_5 = arith.constant 0.000000e+00 : f32
    %7 = vector.broadcast %cst_5 : f32 to vector<8x32xf32>
    %8 = arith.maximumf %6, %7 : vector<8x32xf32>
    %c0_6 = arith.constant 0 : index
    %c0_7 = arith.constant 0 : index
    %9 = vector.load %arg4[%c0_6, %c0_7] : memref<3x32xbf16, #tpu.memory_space<vmem>>, vector<3x32xbf16>
    %10 = arith.truncf %8 : vector<8x32xf32> to vector<8x32xbf16>
    %cst_8 = arith.constant dense<0.000000e+00> : vector<3x8xf32>
    %11 = tpu.matmul %9, %10, %cst_8 {dimension_numbers = #tpu.dot_dimension_numbers<[1], [1], [0], [0], [0, 0, 1, 0], [], []>} : vector<3x32xbf16>, vector<8x32xbf16>, vector<3x8xf32> -> vector<3x8xf32>
    %c0_9 = arith.constant 0 : index
    %c0_10 = arith.constant 0 : index
    %12 = vector.load %arg5[%c0_9, %c0_10] : memref<3x1xf32, #tpu.memory_space<vmem>>, vector<3x1xf32>
    %13 = vector.broadcast %12 : vector<3x1xf32> to vector<3x8xf32>
    %14 = arith.addf %11, %13 : vector<3x8xf32>
    %c0_11 = arith.constant 0 : index
    %c0_12 = arith.constant 0 : index
    %15 = vector.load %arg6[%c0_11, %c0_12] : memref<3x8xf32, #tpu.memory_space<vmem>>, vector<3x8xf32>
    tpu.vector_store %arg6[%c0_11, %c0_12], %14 {strides = array<i32>} : memref<3x8xf32, #tpu.memory_space<vmem>>, vector<3x8xf32>,
    return
  }
  func.func @transform_0(%arg0: i32) -> (i32, i32) {
    %c0_i32 = arith.constant 0 : i32
    %c0_i32_0 = arith.constant 0 : i32
    return %arg0, %c0_i32 : i32, i32
  }
  func.func @transform_1(%arg0: i32) -> (i32, i32) {
    %c0_i32 = arith.constant 0 : i32
    %c0_i32_0 = arith.constant 0 : i32
    %c0_i32_1 = arith.constant 0 : i32
    return %c0_i32, %c0_i32_0 : i32, i32
  }
  func.func @transform_2(%arg0: i32) -> (i32, i32) {
    %c0_i32 = arith.constant 0 : i32
    %c0_i32_0 = arith.constant 0 : i32
    %c0_i32_1 = arith.constant 0 : i32
    return %c0_i32, %c0_i32_0 : i32, i32
  }
  func.func @transform_3(%arg0: i32) -> (i32, i32) {
    %c0_i32 = arith.constant 0 : i32
    %c0_i32_0 = arith.constant 0 : i32
    %c0_i32_1 = arith.constant 0 : i32
    return %c0_i32, %c0_i32_0 : i32, i32
  }
  func.func @transform_4(%arg0: i32) -> (i32, i32) {
    %c0_i32 = arith.constant 0 : i32
    %c0_i32_0 = arith.constant 0 : i32
    %c0_i32_1 = arith.constant 0 : i32
    return %c0_i32, %c0_i32_0 : i32, i32
  }
  func.func @transform_5(%arg0: i32) -> (i32, i32) {
    %c0_i32 = arith.constant 0 : i32
    %c0_i32_0 = arith.constant 0 : i32
    return %c0_i32, %arg0 : i32, i32
  }
}

</mosaic_0001>

<llo_original>
// kernel: _pallas_forward.1
$region0: #{_pallas_forward.1}
  #allocation0 [shape = 'u32[]', space=smem, size = 0x4, offset = 0x4, fixed_abs, tag = 'smem constant byte address 0x4 - core index']
  #allocation1 [shape = 'u32[72,128]{1,0:T(1,128)}', space=vmem, size = 0x9000, scoped, tag = 'internal scratch']
  %s0 = inlined_call_operand.vmem [shape: f32[8,11], index: 0, kind: input, shape index: {}]
  %s1 = inlined_call_operand.vmem [shape: bf16[11,32], index: 1, kind: input, shape index: {}]
  %s2 = inlined_call_operand.vmem [shape: f32[1,32], index: 2, kind: input, shape index: {}]
  %s3 = inlined_call_operand.vmem [shape: bf16[3,32], index: 3, kind: input, shape index: {}]
  %s4 = inlined_call_operand.vmem [shape: f32[3,1], index: 4, kind: input, shape index: {}]
  %s5 = inlined_call_operand.vmem [shape: f32[3,8], index: 5, kind: output, shape index: {}]
  %s6 = sld [smem:[#allocation0]]
  $region30: #{_pallas_forward.1} parent=0
    _
  %s8 = ssub.s32 1, %s6
  %s9 = scalar_select 0, %s8, %s6
  // Predicated region
  $region2: #{_pallas_forward.1} parent=0 // pred_check
    _
  $region3: #{_pallas_forward.1} parent=0 // pred_check_branch
    %11 = sbr.rel (0) target = $region5
  $region4: #{_pallas_forward.1} parent=0 // pred_region
    _
  $region5: #{_pallas_forward.1} parent=0 // pred_fallthru
    _
  // Predicated region
  $region6: #{_pallas_forward.1} parent=0 // pred_check
    _
  $region7: #{_pallas_forward.1} parent=0 // pred_check_branch
    %13 = sbr.rel (0) target = $region9
  $region8: #{_pallas_forward.1} parent=0 // pred_region
    _
  $region9: #{_pallas_forward.1} parent=0 // pred_fallthru
    _
  // Predicated region
  $region10: #{_pallas_forward.1} parent=0 // pred_check
    _
  $region11: #{_pallas_forward.1} parent=0 // pred_check_branch
    %15 = sbr.rel (0) target = $region13
  $region12: #{_pallas_forward.1} parent=0 // pred_region
    _
  $region13: #{_pallas_forward.1} parent=0 // pred_fallthru
    _
  // Predicated region
  $region14: #{_pallas_forward.1} parent=0 // pred_check
    _
  $region15: #{_pallas_forward.1} parent=0 // pred_check_branch
    %17 = sbr.rel (0) target = $region17
  $region16: #{_pallas_forward.1} parent=0 // pred_region
    _
  $region17: #{_pallas_forward.1} parent=0 // pred_fallthru
    _
  // Predicated region
  $region18: #{_pallas_forward.1} parent=0 // pred_check
    _
  $region19: #{_pallas_forward.1} parent=0 // pred_check_branch
    %19 = sbr.rel (0) target = $region21
  $region20: #{_pallas_forward.1} parent=0 // pred_region
    _
  $region21: #{_pallas_forward.1} parent=0 // pred_fallthru
    _
  %v21 = vld [vmem:[%s0] sm:$0xff]
  %v22 = vpack.c.bf16 %v21, %v21
  %v23 = vld [vmem:[%s1] sm:$0xf]
  %v24 = vld [vmem:[%s1 + $0x4] sm:$0x3]
  %v25 = vld [vmem:[%s2] sm:$0x1]
  %v27 = vperm.slane %v25, 0
  %v31 = vunpack.c.l.b16 %v23
  %v32 = vunpack.c.l.b16 %v24
  %v33 = vpack.c.b16 %v32, %v31
  %vm34 = vcmask 89088
  %v36 = vsel %vm34, %v22, 0
  %vm38 = vcmask 1044480
  %vm39 = vcmask 1045504
  %v40 = vsel %vm38, 4294967295, 65535
  %v41 = vsel %vm39, %v40, 0
  %v43 = vand.u32 %v33, %v41
  %45 = vmatpush.bf16.msra.mxu0 0
  %46 = vmatpush.bf16.msra.mxu0 0
  %47 = vmatpush.bf16.msra.mxu0 0
  %48 = vmatpush.bf16.msra.mxu0 0
  %49 = vmatpush.bf16.msra.mxu0 0
  %50 = vmatpush.bf16.msra.mxu0 0
  %51 = vmatpush.bf16.msra.mxu0 0
  %52 = vmatpush.bf16.msra.mxu0 %v43
  %53 = vmatmul.bf16.gmra.mxu0 %v36
  %v54 = vpop.f32.mrf.mxu0
  %v55 = vadd.f32 %v27, %v54
  %v56 = vpop.f32.mrf.mxu0
  %57 = vdwg.mxu0
  %v58 = vmax.f32 %v55, 0.0
  %v59 = vld [vmem:[%s3] sm:$0x3]
  %v60 = vpack.c.bf16 %v58, %v58
  %v61 = vld [vmem:[%s4] sm:$0x7]
  %63 = vset.pattern.permute.xlu0 0
  %64 = vperm.xlu0 %63, %v61
  %v65 = vpop.permute.xlu0 %64
  %vm67 = vcmask 261120
  %v69 = vsel %vm67, %v59, 0
  %v72 = vsel %vm67, %v60, 0
  %74 = vmatpush.bf16.xpose.msra.mxu0 0
  %75 = vmatpush.bf16.xpose.msra.mxu0 0
  %76 = vmatpush.bf16.xpose.msra.mxu0 0
  %77 = vmatpush.bf16.xpose.msra.mxu0 0
  %78 = vmatpush.bf16.xpose.msra.mxu0 0
  %79 = vmatpush.bf16.xpose.msra.mxu0 0
  %80 = vmatpush.bf16.xpose.msra.mxu0 0
  %81 = vmatpush.bf16.xpose.msra.mxu0 %v72
  %82 = vmatmul.bf16.gmra.mxu0 %v69
  %v83 = vpop.f32.mrf.mxu0
  %v84 = vadd.f32 %v65, %v83
  %v85 = vpop.f32.mrf.mxu0
  %86 = vdwg.mxu0
  %vm87 = vcmask 59392
  %88 = vst.msk [vmem:[%s5] sm:$0x7] %vm87, %v84
  // Predicated region
  $region22: #{_pallas_forward.1} parent=0 // pred_check
    _
  $region23: #{_pallas_forward.1} parent=0 // pred_check_branch
    %90 = sbr.rel (0) target = $region25
  $region24: #{_pallas_forward.1} parent=0 // pred_region
    _
  $region25: #{_pallas_forward.1} parent=0 // pred_fallthru
    _
  // Predicated region
  $region26: #{_pallas_forward.1} parent=0 // pred_check
    _
  $region27: #{_pallas_forward.1} parent=0 // pred_check_branch
    %92 = sbr.rel (0) target = $region29
  $region28: #{_pallas_forward.1} parent=0 // pred_region
    _
  $region29: #{_pallas_forward.1} parent=0 // pred_fallthru
    _

</llo_original>
